<compile_context>
chip_gen: v7x
topology: tpu7x:2x2x1
jax: 0.10.0
libtpu: 0.0.40
codegen_flags: <defaults>
</compile_context>

<pallas_src>
import functools
import math

import jax
import jax.numpy as jnp
import numpy as np
from jax.experimental import pallas as pl
from jax.experimental.pallas import tpu as pltpu

_GELU_COEFF = math.sqrt(2.0 / math.pi)
_MIB = 1024 * 1024


def _gelu_tanh(x):
    # Tanh-approximation GELU, exactly as in the PyTorch module.
    cdf = 0.5 * (1.0 + jnp.tanh(_GELU_COEFF * (x + 0.044715 * (x * x * x))))
    return x * cdf


def _round_up(x, m):
    return ((x + m - 1) // m) * m


def _sublane(dtype):
    # Minimum second-to-last tile dim per dtype (sub-32-bit packs along sublanes).
    return {4: 8, 2: 16, 1: 32}.get(jnp.dtype(dtype).itemsize, 8)


def _tpu_generation():
    try:
        kind = jax.devices()[0].device_kind.lower()
    except Exception:
        return "unknown"
    if "v5 lite" in kind or "v5e" in kind or "v5lite" in kind:
        return "v5e"
    if "v6" in kind:
        return "v6e"
    if "v7" in kind or "7x" in kind:
        return "v7x"
    return "unknown"


def _vmem_budget_bytes(gen):
    cap = None
    try:
        cap = int(pltpu.get_tpu_info().vmem_capacity_bytes)
    except Exception:
        cap = None
    if cap is None:
        cap = {"v5e": 128 * _MIB, "v6e": 128 * _MIB, "v7x": 64 * _MIB}.get(gen, 64 * _MIB)
    if cap <= 64 * _MIB:
        # v7x (or unknown, assumed small): leave headroom for compiler scratch.
        return min(cap - 12 * _MIB, 52 * _MIB)
    # v5e / v6e: 128 MiB physical -> use most of it.
    return min(cap - 28 * _MIB, 100 * _MIB)


# ----------------------------------------------------------------------------
# Kernels
# ----------------------------------------------------------------------------

def _fused_kernel(x_ref, w1_ref, b1_ref, w2_ref, b2_ref, o_ref, *, acts_dtype):
    """Weights VMEM-resident: single pass over the hidden dim, no accumulator."""
    x = x_ref[...]                                               # (tm, Cp)
    h = jnp.dot(x, w1_ref[...], preferred_element_type=jnp.float32)
    h = h + b1_ref[...].astype(jnp.float32)
    h = _gelu_tanh(h.astype(acts_dtype))                         # bf16 on v6e/v7x
    y = jnp.dot(h.astype(w2_ref.dtype), w2_ref[...],
                preferred_element_type=jnp.float32)
    y = y + b2_ref[...].astype(jnp.float32)
    o_ref[...] = (x.astype(jnp.float32) + y).astype(o_ref.dtype)


def _chunked_kernel(x_ref, w1_ref, b1_ref, w2_ref, b2_ref, o_ref, acc_ref, *,
                    acts_dtype):
    """Hidden dim tiled (reduction axis last); f32 accumulator in VMEM."""
    j = pl.program_id(1)
    x = x_ref[...]                                               # (tm, Cp)
    h = jnp.dot(x, w1_ref[...], preferred_element_type=jnp.float32)
    h = h + b1_ref[...].astype(jnp.float32)
    h = _gelu_tanh(h.astype(acts_dtype))
    part = jnp.dot(h.astype(w2_ref.dtype), w2_ref[...],
                   preferred_element_type=jnp.float32)

    @pl.when(j == 0)
    def _first():
        # Skip the zero-init store pass: the first partial product (with b2
        # folded in) lands directly in the accumulator.
        acc_ref[...] = part + b2_ref[...].astype(jnp.float32)

    @pl.when(j > 0)
    def _accumulate():
        acc_ref[...] += part

    @pl.when(j == pl.num_programs(1) - 1)
    def _finalize():
        o_ref[...] = (x.astype(jnp.float32) + acc_ref[...]).astype(o_ref.dtype)


# ----------------------------------------------------------------------------
# Wrapper
# ----------------------------------------------------------------------------

def prepare_params(w1, b1, w2, b2, *, compute_dtype=None):
    """Pad + cast the Projector weights once (hoisted out of the per-call path).

    w1: (C, H); b1: (H,); w2: (H, C); b2: (C,).  compute_dtype=bf16 enables the
    fast bf16 MXU path (f32 accumulation is kept inside the kernel).
    """
    C, H = w1.shape
    Cp = _round_up(C, 128)
    Hp = _round_up(H, 128)
    wdt = jnp.dtype(compute_dtype) if compute_dtype is not None else jnp.dtype(w1.dtype)

    def _maybe_pad(a, tgt):
        pads = tuple((0, t - s) for s, t in zip(a.shape, tgt))
        return a if all(p == (0, 0) for p in pads) else jnp.pad(a, pads)

    w1p = _maybe_pad(w1, (Cp, Hp)).astype(wdt)
    w2p = _maybe_pad(w2, (Hp, Cp)).astype(wdt)
    # Biases stay f32; they are added on the f32 accumulation path.
    b1p = _maybe_pad(b1.reshape(1, H).astype(jnp.float32), (1, Hp))
    b2p = _maybe_pad(b2.reshape(1, C).astype(jnp.float32), (1, Cp))
    # TODO(synk): generation-gated int8 (v5e/v6e) / fp8 (v7x) weight quantization
    # with dequant scales applied in the f32 accumulator is a further option.
    return {"w1": w1p, "b1": b1p, "w2": w2p, "b2": b2p,
            "C": C, "H": H, "Cp": Cp, "Hp": Hp, "compute_dtype": wdt}


def projector(x, params, *, tm=None, max_th=None):
    """x: (B, T, C). Returns x + MLP(x), same dtype/shape as x."""
    B, T, C = x.shape
    assert C == params["C"], "channel mismatch with prepared params"
    H, Cp, Hp = params["H"], params["Cp"], params["Hp"]
    M = B * T

    gen = _tpu_generation()
    budget = _vmem_budget_bytes(gen)

    in_dt = jnp.dtype(params["compute_dtype"])     # MXU operand dtype for x
    out_dt = jnp.dtype(x.dtype)                    # output keeps x's dtype
    in_sz = in_dt.itemsize
    out_sz = out_dt.itemsize
    w_sz = jnp.dtype(params["w1"].dtype).itemsize
    act_sz = in_sz

    sub = max(_sublane(in_dt), _sublane(out_dt))

    # Row tile: large to amortize weight DMA / per-step overhead, dtype-aware
    # sublane rounding; on v7x make sure both TensorCores get a row tile.
    if tm is None:
        tm = 512 if gen in ("v5e", "v6e") else 256
    tm = max(sub, min(_round_up(tm, sub), _round_up(M, sub)))
    if gen == "v7x" and _round_up(M, tm) // tm < 2 and M >= 2 * sub:
        tm = _round_up(pl.cdiv(M, 2), sub)

    def _fused_vmem(tm_):
        return int(2 * tm_ * Cp * (in_sz + out_sz)      # x / out blocks (dbl-buf)
                   + 4 * Cp * Hp * w_sz                 # W1 + W2 (dbl-buf, conservative)
                   + 2 * (Hp + Cp) * 4                  # biases
                   + tm_ * Hp * (4 + act_sz)            # hidden acts (f32 + cast)
                   + 2 * tm_ * Cp * 4)                  # f32 residual temporaries

    def _chunked_vmem(tm_, th_):
        return int(2 * tm_ * Cp * (in_sz + out_sz)
                   + 4 * Cp * th_ * w_sz                # W1/W2 chunks (dbl-buf)
                   + 2 * (th_ + Cp) * 4
                   + tm_ * th_ * (4 + act_sz)
                   + 2 * tm_ * Cp * 4)                  # incl. acc scratch

    SAFETY = 1.15
    th_cap = Hp if max_th is None else min(int(max_th), Hp)
    use_fused = (th_cap >= Hp) and (SAFETY * _fused_vmem(tm) <= budget)

    if use_fused:
        th = Hp
        est = _fused_vmem(tm)
    else:
        # Largest hidden chunk (multiple of 128, dividing Hp, <= th_cap) that fits.
        cands = [Hp // n for n in range(1, Hp // 128 + 1)
                 if Hp % n == 0 and (Hp // n) % 128 == 0 and (Hp // n) <= th_cap]
        th = None
        for cand in cands:
            if SAFETY * _chunked_vmem(tm, cand) <= budget:
                th = cand
                break
        if th is None:
            th = 128
            while SAFETY * _chunked_vmem(tm, th) > budget and tm > sub:
                tm = max(sub, _round_up(tm // 2, sub))
        est = _chunked_vmem(tm, th)
        # TODO(synk): when chunked on v5e/v6e with VMEM headroom, the W1/W2
        # BlockSpecs could use pipeline_mode=pl.Buffered(3) to hide exposed DMA.

    Mp = _round_up(M, tm)
    n_row_tiles = Mp // tm
    vmem_limit = int(min(max(int(est * 1.3), 32 * _MIB), budget))

    # Activations: pad rows/lanes (skipped when already aligned) and cast once.
    x2 = x.reshape(M, C)
    if (Mp, Cp) != (M, C):
        x2 = jnp.pad(x2, ((0, Mp - M), (0, Cp - C)))
    x2 = x2.astype(in_dt)

    # GELU in bf16 only where the VPU/EUP support it (v6e / v7x); f32 on v5e.
    acts_dtype = (jnp.bfloat16
                  if (in_dt == jnp.bfloat16 and gen in ("v6e", "v7x"))
                  else jnp.float32)

    weight_passes = 1 if use_fused else n_row_tiles
    cost = pl.CostEstimate(
        flops=4 * M * C * H,                    # two matmuls, 2*M*C*H each
        transcendentals=M * H,                  # tanh per hidden activation
        bytes_accessed=int(M * C * (in_sz + out_sz)
                           + weight_passes * 2 * C * H * w_sz
                           + (C + H) * 4),
    )

    args = (x2, params["w1"], params["b1"], params["w2"], params["b2"])

    if use_fused:
        out = pl.pallas_call(
            functools.partial(_fused_kernel, acts_dtype=acts_dtype),
            out_shape=jax.ShapeDtypeStruct((Mp, Cp), out_dt),
            grid_spec=pltpu.PrefetchScalarGridSpec(
                num_scalar_prefetch=0,
                grid=(n_row_tiles,),
                in_specs=[
                    pl.BlockSpec((tm, Cp), lambda i: (i, 0)),    # x rows
                    pl.BlockSpec((Cp, Hp), lambda i: (0, 0)),    # W1 (resident)
                    pl.BlockSpec((1, Hp), lambda i: (0, 0)),     # b1
                    pl.BlockSpec((Hp, Cp), lambda i: (0, 0)),    # W2 (resident)
                    pl.BlockSpec((1, Cp), lambda i: (0, 0)),     # b2
                ],
                out_specs=pl.BlockSpec((tm, Cp), lambda i: (i, 0)),
            ),
            compiler_params=pltpu.CompilerParams(
                dimension_semantics=("parallel",),
                vmem_limit_bytes=vmem_limit,
            ),
            cost_estimate=cost,
        )(*args)
    else:
        out = pl.pallas_call(
            functools.partial(_chunked_kernel, acts_dtype=acts_dtype),
            out_shape=jax.ShapeDtypeStruct((Mp, Cp), out_dt),
            grid_spec=pltpu.PrefetchScalarGridSpec(
                num_scalar_prefetch=0,
                grid=(n_row_tiles, Hp // th),    # hidden = reduction axis (last)
                in_specs=[
                    pl.BlockSpec((tm, Cp), lambda i, j: (i, 0)),  # x rows
                    pl.BlockSpec((Cp, th), lambda i, j: (0, j)),  # W1 chunk
                    pl.BlockSpec((1, th), lambda i, j: (0, j)),   # b1 chunk
                    pl.BlockSpec((th, Cp), lambda i, j: (j, 0)),  # W2 chunk
                    pl.BlockSpec((1, Cp), lambda i, j: (0, 0)),   # b2
                ],
                out_specs=pl.BlockSpec((tm, Cp), lambda i, j: (i, 0)),
                scratch_shapes=[pltpu.VMEM((tm, Cp), jnp.float32)],
            ),
            compiler_params=pltpu.CompilerParams(
                dimension_semantics=("parallel", "arbitrary"),
                vmem_limit_bytes=vmem_limit,
            ),
            cost_estimate=cost,
        )(*args)

    return out[:M, :C].reshape(B, T, C)


# ----------------------------------------------------------------------------
# Reference / params
# ----------------------------------------------------------------------------

def init_params(key, in_channel, hidden_size):
    """Deterministic synthetic init mirroring the module:
       truncated_normal(std=0.02) weights, zero biases."""
    k1, k2 = jax.random.split(key)
    # conv_down weight: torch shape (H, C, 1, 1) -> stored here as (C, H)
    w1 = (jax.random.truncated_normal(k1, -2.0, 2.0, (in_channel, hidden_size),
                                      dtype=jnp.float32) * 0.02)
    b1 = jnp.zeros((hidden_size,), jnp.float32)
    # conv_up weight: torch shape (C, H, 1, 1) -> stored here as (H, C)
    w2 = (jax.random.truncated_normal(k2, -2.0, 2.0, (hidden_size, in_channel),
                                      dtype=jnp.float32) * 0.02)
    b2 = jnp.zeros((in_channel,), jnp.float32)
    return w1, b1, w2, b2


def projector_ref(x, w1, b1, w2, b2):
    """Pure-JAX reference for correctness checking."""
    h = jnp.einsum("btc,ch->bth", x, w1) + b1
    h = _gelu_tanh(h)
    y = jnp.einsum("bth,hc->btc", h, w2) + b2
    return x + y


if __name__ == "__main__":
    key = jax.random.PRNGKey(0)
    kx, kp, kb1, kb2, kx2, kp2 = jax.random.split(key, 6)

    # --- Test 1: f32 operands, weights VMEM-resident (fused single-pass). ---
    B, T, C, H = 2, 8, 32, 64
    x = jax.random.normal(kx, (B, T, C), dtype=jnp.float32)
    w1, b1, w2, b2 = init_params(kp, C, H)
    # Non-zero biases to exercise the bias / b2-fold paths.
    b1 = 0.1 * jax.random.normal(kb1, (H,), dtype=jnp.float32)
    b2 = 0.05 * jax.random.normal(kb2, (C,), dtype=jnp.float32)

    params_f32 = prepare_params(w1, b1, w2, b2)
    out = jax.block_until_ready(projector(x, params_f32))
    ref = projector_ref(x, w1, b1, w2, b2)
    np.testing.assert_allclose(np.asarray(out), np.asarray(ref),
                               rtol=1e-5, atol=1e-5)

    # --- Test 2: bf16 MXU operands (f32 accumulation inside the kernel). ----
    params_bf16 = prepare_params(w1, b1, w2, b2, compute_dtype=jnp.bfloat16)
    x_bf16 = x.astype(jnp.bfloat16)
    out_bf16 = jax.block_until_ready(projector(x_bf16, params_bf16))
    ref_bf16 = projector_ref(x_bf16.astype(jnp.float32),
                             w1.astype(jnp.bfloat16).astype(jnp.float32), b1,
                             w2.astype(jnp.bfloat16).astype(jnp.float32), b2)
    np.testing.assert_allclose(np.asarray(out_bf16).astype(np.float32),
                               np.asarray(ref_bf16),
                               rtol=2e-2, atol=2e-2)

    # --- Test 3: forced hidden-chunked fallback (f32 accumulator path). -----
    H2 = 256
    x2 = jax.random.normal(kx2, (B, T, C), dtype=jnp.float32)
    w1b, b1b, w2b, b2b = init_params(kp2, C, H2)
    params_chunk = prepare_params(w1b, b1b, w2b, b2b)
    out_chunk = jax.block_until_ready(projector(x2, params_chunk, max_th=128))
    ref_chunk = projector_ref(x2, w1b, b1b, w2b, b2b)
    np.testing.assert_allclose(np.asarray(out_chunk), np.asarray(ref_chunk),
                               rtol=1e-5, atol=1e-5)

    print("KERNEL_OK")
</pallas_src>

<mosaic_0001>
module attributes {stable_mosaic.version = 11 : i64} {
  func.func @_fused_kernel(%arg0: i32, %arg1: memref<16x128xf32, #tpu.memory_space<vmem>>, %arg2: memref<128x128xf32, #tpu.memory_space<vmem>>, %arg3: memref<1x128xf32, #tpu.memory_space<vmem>>, %arg4: memref<128x128xf32, #tpu.memory_space<vmem>>, %arg5: memref<1x128xf32, #tpu.memory_space<vmem>>, %arg6: memref<16x128xf32, #tpu.memory_space<vmem>>) attributes {dimension_semantics = [#tpu.dimension_semantics<parallel>], iteration_bounds = array<i64: 1>, scalar_prefetch = 0 : i64, scratch_operands = 0 : i64, tpu.core_type = #tpu.core_type<tc>, window_params = [{transform_indices = @transform_0, window_bounds = array<i64: 16, 128>}, {pipeline_mode = #tpu.pipeline_mode<synchronous>, transform_indices = @transform_1, window_bounds = array<i64: 128, 128>}, {pipeline_mode = #tpu.pipeline_mode<synchronous>, transform_indices = @transform_2, window_bounds = array<i64: 1, 128>}, {pipeline_mode = #tpu.pipeline_mode<synchronous>, transform_indices = @transform_3, window_bounds = array<i64: 128, 128>}, {pipeline_mode = #tpu.pipeline_mode<synchronous>, transform_indices = @transform_4, window_bounds = array<i64: 1, 128>}, {transform_indices = @transform_5, window_bounds = array<i64: 16, 128>}]} {
    %c0 = arith.constant 0 : index
    %c0_0 = arith.constant 0 : index
    %0 = vector.load %arg1[%c0, %c0_0] : memref<16x128xf32, #tpu.memory_space<vmem>>, vector<16x128xf32>
    %c0_1 = arith.constant 0 : index
    %c0_2 = arith.constant 0 : index
    %1 = vector.load %arg2[%c0_1, %c0_2] : memref<128x128xf32, #tpu.memory_space<vmem>>, vector<128x128xf32>
    %cst = arith.constant dense<0.000000e+00> : vector<16x128xf32>
    %2 = tpu.matmul %0, %1, %cst {dimension_numbers = #tpu.dot_dimension_numbers<[1], [0], [0], [1], [0, 0, 1, 1], [], []>} : vector<16x128xf32>, vector<128x128xf32>, vector<16x128xf32> -> vector<16x128xf32>
    %c0_3 = arith.constant 0 : index
    %c0_4 = arith.constant 0 : index
    %3 = vector.load %arg3[%c0_3, %c0_4] : memref<1x128xf32, #tpu.memory_space<vmem>>, vector<1x128xf32>
    %4 = vector.broadcast %3 : vector<1x128xf32> to vector<16x128xf32>
    %5 = arith.addf %2, %4 : vector<16x128xf32>
    %6 = arith.mulf %5, %5 : vector<16x128xf32>
    %7 = arith.mulf %6, %5 : vector<16x128xf32>
    %cst_5 = arith.constant 4.471500e-02 : f32
    %8 = vector.broadcast %cst_5 : f32 to vector<16x128xf32>
    %9 = arith.mulf %8, %7 : vector<16x128xf32>
    %10 = arith.addf %5, %9 : vector<16x128xf32>
    %cst_6 = arith.constant 0.797884583 : f32
    %11 = vector.broadcast %cst_6 : f32 to vector<16x128xf32>
    %12 = arith.mulf %11, %10 : vector<16x128xf32>
    %13 = math.tanh %12 : vector<16x128xf32>
    %cst_7 = arith.constant 1.000000e+00 : f32
    %14 = vector.broadcast %cst_7 : f32 to vector<16x128xf32>
    %15 = arith.addf %14, %13 : vector<16x128xf32>
    %cst_8 = arith.constant 5.000000e-01 : f32
    %16 = vector.broadcast %cst_8 : f32 to vector<16x128xf32>
    %17 = arith.mulf %16, %15 : vector<16x128xf32>
    %18 = arith.mulf %5, %17 : vector<16x128xf32>
    %c0_9 = arith.constant 0 : index
    %c0_10 = arith.constant 0 : index
    %19 = vector.load %arg4[%c0_9, %c0_10] : memref<128x128xf32, #tpu.memory_space<vmem>>, vector<128x128xf32>
    %cst_11 = arith.constant dense<0.000000e+00> : vector<16x128xf32>
    %20 = tpu.matmul %18, %19, %cst_11 {dimension_numbers = #tpu.dot_dimension_numbers<[1], [0], [0], [1], [0, 0, 1, 1], [], []>} : vector<16x128xf32>, vector<128x128xf32>, vector<16x128xf32> -> vector<16x128xf32>
    %c0_12 = arith.constant 0 : index
    %c0_13 = arith.constant 0 : index
    %21 = vector.load %arg5[%c0_12, %c0_13] : memref<1x128xf32, #tpu.memory_space<vmem>>, vector<1x128xf32>
    %22 = vector.broadcast %21 : vector<1x128xf32> to vector<16x128xf32>
    %23 = arith.addf %20, %22 : vector<16x128xf32>
    %24 = arith.addf %0, %23 : vector<16x128xf32>
    %c0_14 = arith.constant 0 : index
    %c0_15 = arith.constant 0 : index
    %25 = vector.load %arg6[%c0_14, %c0_15] : memref<16x128xf32, #tpu.memory_space<vmem>>, vector<16x128xf32>
    tpu.vector_store %arg6[%c0_14, %c0_15], %24 {strides = array<i32>} : memref<16x128xf32, #tpu.memory_space<vmem>>, vector<16x128xf32>,
    return
  }
  func.func @transform_0(%arg0: i32) -> (i32, i32) {
    %c0_i32 = arith.constant 0 : i32
    %c0_i32_0 = arith.constant 0 : i32
    return %arg0, %c0_i32 : i32, i32
  }
  func.func @transform_1(%arg0: i32) -> (i32, i32) {
    %c0_i32 = arith.constant 0 : i32
    %c0_i32_0 = arith.constant 0 : i32
    %c0_i32_1 = arith.constant 0 : i32
    return %c0_i32, %c0_i32_0 : i32, i32
  }
  func.func @transform_2(%arg0: i32) -> (i32, i32) {
    %c0_i32 = arith.constant 0 : i32
    %c0_i32_0 = arith.constant 0 : i32
    %c0_i32_1 = arith.constant 0 : i32
    return %c0_i32, %c0_i32_0 : i32, i32
  }
  func.func @transform_3(%arg0: i32) -> (i32, i32) {
    %c0_i32 = arith.constant 0 : i32
    %c0_i32_0 = arith.constant 0 : i32
    %c0_i32_1 = arith.constant 0 : i32
    return %c0_i32, %c0_i32_0 : i32, i32
  }
  func.func @transform_4(%arg0: i32) -> (i32, i32) {
    %c0_i32 = arith.constant 0 : i32
    %c0_i32_0 = arith.constant 0 : i32
    %c0_i32_1 = arith.constant 0 : i32
    return %c0_i32, %c0_i32_0 : i32, i32
  }
  func.func @transform_5(%arg0: i32) -> (i32, i32) {
    %c0_i32 = arith.constant 0 : i32
    %c0_i32_0 = arith.constant 0 : i32
    return %arg0, %c0_i32 : i32, i32
  }
}

</mosaic_0001>

<llo_original>
// kernel: tpu_custom_call.1
$region0: #{tpu_custom_call.1}
  #allocation0 [shape = 'u32[]', space=smem, size = 0x4, offset = 0x4, fixed_abs, tag = 'smem constant byte address 0x4 - core index']
  #allocation1 [shape = 'u32[144,128]{1,0:T(1,128)}', space=vmem, size = 0x12000, scoped, tag = 'internal scratch']
  %s0 = inlined_call_operand.hbm [shape: f32[16,128], index: 0, kind: input, shape index: {}]
  %s1 = inlined_call_operand.hbm [shape: f32[128,128], index: 1, kind: input, shape index: {}]
  %s2 = inlined_call_operand.vmem [shape: f32[1,128], index: 2, kind: input, shape index: {}]
  %s3 = inlined_call_operand.hbm [shape: f32[128,128], index: 3, kind: input, shape index: {}]
  %s4 = inlined_call_operand.vmem [shape: f32[1,128], index: 4, kind: input, shape index: {}]
  %s5 = inlined_call_operand.hbm [shape: f32[16,128], index: 5, kind: output, shape index: {}]
  %s6 = sld [smem:[#allocation0]]
  $region42: #{tpu_custom_call.1} parent=0
    _
  %s8 = ssub.s32 1, %s6
  %s9 = scalar_select 0, %s8, %s6
  $region1: #{tpu_custom_call.1} parent=0
    #allocation2 [shape = 'u8[8192]{0}', space=vmem, size = 0x2000, scoped, tag = 'input window, operand 0, single buffered']
    #allocation3 [shape = 's32[1]{0}', space=sflag, size = 0x4, scoped, tag = 'scoped memory for tpu_custom_call.1']
    #allocation4 [shape = 's32[1]{0}', space=sflag, size = 0x4, scoped, tag = 'scoped memory for tpu_custom_call.1']
    #allocation5 [shape = 'u8[65536]{0}', space=vmem, size = 0x10000, scoped, tag = 'input window, operand 1, single buffered']
    #allocation6 [shape = 's32[1]{0}', space=sflag, size = 0x4, scoped, tag = 'scoped memory for tpu_custom_call.1']
    #allocation7 [shape = 'u8[65536]{0}', space=vmem, size = 0x10000, scoped, tag = 'input window, operand 3, single buffered']
    #allocation8 [shape = 'u8[8192]{0}', space=vmem, size = 0x2000, scoped, tag = 'output window, operand 0, single buffered']
    %10 = vsyncpa [#allocation3], 0
    %11 = vsyncpa [#allocation6], 0
    %12 = vsyncpa [#allocation4], 0
    // Predicated region
    $region2: #{tpu_custom_call.1} parent=1 // pred_check
      _
    $region3: #{tpu_custom_call.1} parent=1 // pred_check_branch
      %14 = sbr.rel (0) target = $region5
    $region4: #{tpu_custom_call.1} parent=1 // pred_region
      %s16 = ssub.s32 256, 256
      %17 = vsyncadd [#allocation3], %s16
      %s18 = sshll.u32 [#allocation2], 4
      %s19 = int_to_ptr.vmem [resolvable:$true] %s18
      %24 = dma.hbm_to_vmem [thread:$0]  %s0, 256, %s19, [#allocation3], 128, 128, 8
    $region5: #{tpu_custom_call.1} parent=1 // pred_fallthru
      _
    // Predicated region
    $region6: #{tpu_custom_call.1} parent=1 // pred_check
      _
    $region7: #{tpu_custom_call.1} parent=1 // pred_check_branch
      %26 = sbr.rel (0) target = $region9
    $region8: #{tpu_custom_call.1} parent=1 // pred_region
      %s28 = ssub.s32 2048, 2048
      %29 = vsyncadd [#allocation6], %s28
      %s30 = sshll.u32 [#allocation5], 4
      %s31 = int_to_ptr.vmem [resolvable:$true] %s30
      %36 = dma.hbm_to_vmem [thread:$0]  %s1, 2048, %s31, [#allocation6], 128, 128, 8
    $region9: #{tpu_custom_call.1} parent=1 // pred_fallthru
      _
    // Predicated region
    $region10: #{tpu_custom_call.1} parent=1 // pred_check
      _
    $region11: #{tpu_custom_call.1} parent=1 // pred_check_branch
      %38 = sbr.rel (0) target = $region13
    $region12: #{tpu_custom_call.1} parent=1 // pred_region
      _
    $region13: #{tpu_custom_call.1} parent=1 // pred_fallthru
      _
    // Predicated region
    $region14: #{tpu_custom_call.1} parent=1 // pred_check
      _
    $region15: #{tpu_custom_call.1} parent=1 // pred_check_branch
      %40 = sbr.rel (0) target = $region17
    $region16: #{tpu_custom_call.1} parent=1 // pred_region
      %s42 = ssub.s32 2048, 2048
      %43 = vsyncadd [#allocation6], %s42
      %s44 = sshll.u32 [#allocation7], 4
      %s45 = int_to_ptr.vmem [resolvable:$true] %s44
      %50 = dma.hbm_to_vmem [thread:$0]  %s3, 2048, %s45, [#allocation6], 128, 128, 8
    $region17: #{tpu_custom_call.1} parent=1 // pred_fallthru
      _
    // Predicated region
    $region18: #{tpu_custom_call.1} parent=1 // pred_check
      _
    $region19: #{tpu_custom_call.1} parent=1 // pred_check_branch
      %52 = sbr.rel (0) target = $region21
    $region20: #{tpu_custom_call.1} parent=1 // pred_region
      _
    $region21: #{tpu_custom_call.1} parent=1 // pred_fallthru
      _
    // Predicated region
    $region22: #{tpu_custom_call.1} parent=1 // pred_check
      _
    $region23: #{tpu_custom_call.1} parent=1 // pred_check_branch
      %54 = sbr.rel (0) target = $region25
    $region24: #{tpu_custom_call.1} parent=1 // pred_region
      %55 = dma.done [#allocation3], 256
    $region25: #{tpu_custom_call.1} parent=1 // pred_fallthru
      _
    // Predicated region
    $region26: #{tpu_custom_call.1} parent=1 // pred_check
      _
    $region27: #{tpu_custom_call.1} parent=1 // pred_check_branch
      %57 = sbr.rel (0) target = $region29
    $region28: #{tpu_custom_call.1} parent=1 // pred_region
      %58 = dma.done [#allocation6], 2048
    $region29: #{tpu_custom_call.1} parent=1 // pred_fallthru
      _
    // Predicated region
    $region30: #{tpu_custom_call.1} parent=1 // pred_check
      _
    $region31: #{tpu_custom_call.1} parent=1 // pred_check_branch
      %60 = sbr.rel (0) target = $region33
    $region32: #{tpu_custom_call.1} parent=1 // pred_region
      %61 = dma.done [#allocation6], 2048
    $region33: #{tpu_custom_call.1} parent=1 // pred_fallthru
      _
    %v62 = vld [vmem:[#allocation2] sm:$0xff]
    %v63 = vld [vmem:[#allocation2 + $0x8] sm:$0xff]
    %v64 = vld [vmem:[#allocation5] sm:$0xff]
    %v65 = vld [vmem:[#allocation5 + $0x8] sm:$0xff]
    %v66 = vld [vmem:[#allocation5 + $0x10] sm:$0xff]
    %v67 = vld [vmem:[#allocation5 + $0x18] sm:$0xff]
    %v68 = vld [vmem:[#allocation5 + $0x20] sm:$0xff]
    %v69 = vld [vmem:[#allocation5 + $0x28] sm:$0xff]
    %v70 = vld [vmem:[#allocation5 + $0x30] sm:$0xff]
    %v71 = vld [vmem:[#allocation5 + $0x38] sm:$0xff]
    %v72 = vld [vmem:[#allocation5 + $0x40] sm:$0xff]
    %v73 = vld [vmem:[#allocation5 + $0x48] sm:$0xff]
    %v74 = vld [vmem:[#allocation5 + $0x50] sm:$0xff]
    %v75 = vld [vmem:[#allocation5 + $0x58] sm:$0xff]
    %v76 = vld [vmem:[#allocation5 + $0x60] sm:$0xff]
    %v77 = vld [vmem:[#allocation5 + $0x68] sm:$0xff]
    %v78 = vld [vmem:[#allocation5 + $0x70] sm:$0xff]
    %v79 = vld [vmem:[#allocation5 + $0x78] sm:$0xff]
    %v80 = vld [vmem:[%s2] sm:$0x1]
    %v82 = vlaneseq
    %v83 = vshrl.u32 %v82, 7
    %v84 = vsub.s32 0, %v83
    %v85 = vrot.slane %v80, %v84
    %87 = vmatprep.subr.mxu0 0.0
    %88 = vmatpush1.msra.mxu0 %v64
    %89 = vmatprep.subr.mxu0 0.0
    %90 = vmatpush1.msra.mxu0 %v65
    %91 = vmatprep.subr.mxu0 0.0
    %92 = vmatpush1.msra.mxu0 %v66
    %93 = vmatprep.subr.mxu0 0.0
    %94 = vmatpush1.msra.mxu0 %v67
    %95 = vmatprep.subr.mxu0 0.0
    %96 = vmatpush1.msra.mxu0 %v68
    %97 = vmatprep.subr.mxu0 0.0
    %98 = vmatpush1.msra.mxu0 %v69
    %99 = vmatprep.subr.mxu0 0.0
    %100 = vmatpush1.msra.mxu0 %v70
    %101 = vmatprep.subr.mxu0 0.0
    %102 = vmatpush1.msra.mxu0 %v71
    %103 = vmatprep.subr.mxu0 0.0
    %104 = vmatpush1.msra.mxu0 %v72
    %105 = vmatprep.subr.mxu0 0.0
    %106 = vmatpush1.msra.mxu0 %v73
    %107 = vmatprep.subr.mxu0 0.0
    %108 = vmatpush1.msra.mxu0 %v74
    %109 = vmatprep.subr.mxu0 0.0
    %110 = vmatpush1.msra.mxu0 %v75
    %111 = vmatprep.subr.mxu0 0.0
    %112 = vmatpush1.msra.mxu0 %v76
    %113 = vmatprep.subr.mxu0 0.0
    %114 = vmatpush1.msra.mxu0 %v77
    %115 = vmatprep.subr.mxu0 0.0
    %116 = vmatpush1.msra.mxu0 %v78
    %117 = vmatprep.subr.mxu0 0.0
    %118 = vmatpush1.msra.mxu0 %v79
    %119 = vmatprep.subr.mxu0 0.0
    %120 = vmatpush1.msra.mxu0 0.0
    %121 = vmatprep.subr.mxu0 0.0
    %122 = vmatpush1.msra.mxu0 0.0
    %123 = vmatprep.subr.mxu0 0.0
    %124 = vmatpush1.msra.mxu0 0.0
    %125 = vmatprep.subr.mxu0 0.0
    %126 = vmatpush1.msra.mxu0 0.0
    %127 = vmatprep.subr.mxu0 0.0
    %128 = vmatpush1.msra.mxu0 0.0
    %129 = vmatprep.subr.mxu0 0.0
    %130 = vmatpush1.msra.mxu0 0.0
    %131 = vmatprep.subr.mxu0 0.0
    %132 = vmatpush1.msra.mxu0 0.0
    %133 = vmatprep.subr.mxu0 0.0
    %134 = vmatpush1.msra.mxu0 0.0
    %135 = vmatprep.subr.mxu0 0.0
    %136 = vmatpush1.msra.mxu0 0.0
    %137 = vmatprep.subr.mxu0 0.0
    %138 = vmatpush1.msra.mxu0 0.0
    %139 = vmatprep.subr.mxu0 0.0
    %140 = vmatpush1.msra.mxu0 0.0
    %141 = vmatprep.subr.mxu0 0.0
    %142 = vmatpush1.msra.mxu0 0.0
    %143 = vmatprep.subr.mxu0 0.0
    %144 = vmatpush1.msra.mxu0 0.0
    %145 = vmatprep.subr.mxu0 0.0
    %146 = vmatpush1.msra.mxu0 0.0
    %147 = vmatprep.subr.mxu0 0.0
    %148 = vmatpush1.msra.mxu0 0.0
    %149 = vmatprep.subr.mxu0 0.0
    %150 = vmatpush1.msra.mxu0 0.0
    %151 = vmatprep.mubr.f32.mxu0 0.0
    %152 = vmatmul.mubr.f32.gmra.mrb[0].mxu0 %v62
    %v153 = vpop.f32.mrb[0].mxu0
    %v154 = vadd.f32 %v85, %v153
    %v155 = vpop.f32.mrb[0].mxu0
    %156 = vmatprep.mubr.f32.mxu0 0.0
    %157 = vmatmul.mubr.f32.gmra.mrb[0].mxu0 %v63
    %v158 = vpop.f32.mrb[0].mxu0
    %v159 = vadd.f32 %v85, %v158
    %v160 = vpop.f32.mrb[0].mxu0
    %161 = vdwg.mxu0
    %v162 = vmul.f32 %v154, %v154
    %v163 = vmul.f32 %v159, %v159
    %v164 = vmul.f32 %v162, %v154
    %v165 = vmul.f32 %v163, %v159
    %v166 = vmul.f32 %v164, 0.044715
    %v167 = vmul.f32 %v165, 0.044715
    %v168 = vadd.f32 %v154, %v166
    %v169 = vadd.f32 %v159, %v167
    %v170 = vmul.f32 %v168, 0.7978846
    %v171 = vmul.f32 %v169, 0.7978846
    %v172 = vtanh.pop %v170
    %v173 = vtanh.pop %v171
    %v174 = vadd.f32 %v172, 1.0
    %v175 = vadd.f32 %v173, 1.0
    %v176 = vmul.f32 %v174, 0.5
    %v177 = vmul.f32 %v175, 0.5
    %v178 = vmul.f32 %v154, %v176
    %v179 = vmul.f32 %v159, %v177
    %v180 = vld [vmem:[#allocation7] sm:$0xff]
    %v181 = vld [vmem:[#allocation7 + $0x8] sm:$0xff]
    %v182 = vld [vmem:[#allocation7 + $0x10] sm:$0xff]
    %v183 = vld [vmem:[#allocation7 + $0x18] sm:$0xff]
    %v184 = vld [vmem:[#allocation7 + $0x20] sm:$0xff]
    %v185 = vld [vmem:[#allocation7 + $0x28] sm:$0xff]
    %v186 = vld [vmem:[#allocation7 + $0x30] sm:$0xff]
    %v187 = vld [vmem:[#allocation7 + $0x38] sm:$0xff]
    %v188 = vld [vmem:[#allocation7 + $0x40] sm:$0xff]
    %v189 = vld [vmem:[#allocation7 + $0x48] sm:$0xff]
    %v190 = vld [vmem:[#allocation7 + $0x50] sm:$0xff]
    %v191 = vld [vmem:[#allocation7 + $0x58] sm:$0xff]
    %v192 = vld [vmem:[#allocation7 + $0x60] sm:$0xff]
    %v193 = vld [vmem:[#allocation7 + $0x68] sm:$0xff]
    %v194 = vld [vmem:[#allocation7 + $0x70] sm:$0xff]
    %v195 = vld [vmem:[#allocation7 + $0x78] sm:$0xff]
    %v196 = vld [vmem:[%s4] sm:$0x1]
    %v198 = vlaneseq
    %v199 = vshrl.u32 %v198, 7
    %v200 = vsub.s32 0, %v199
    %v201 = vrot.slane %v196, %v200
    %203 = vmatprep.subr.mxu0 0.0
    %204 = vmatpush1.msra.mxu0 %v180
    %205 = vmatprep.subr.mxu0 0.0
    %206 = vmatpush1.msra.mxu0 %v181
    %207 = vmatprep.subr.mxu0 0.0
    %208 = vmatpush1.msra.mxu0 %v182
    %209 = vmatprep.subr.mxu0 0.0
    %210 = vmatpush1.msra.mxu0 %v183
    %211 = vmatprep.subr.mxu0 0.0
    %212 = vmatpush1.msra.mxu0 %v184
    %213 = vmatprep.subr.mxu0 0.0
    %214 = vmatpush1.msra.mxu0 %v185
    %215 = vmatprep.subr.mxu0 0.0
    %216 = vmatpush1.msra.mxu0 %v186
    %217 = vmatprep.subr.mxu0 0.0
    %218 = vmatpush1.msra.mxu0 %v187
    %219 = vmatprep.subr.mxu0 0.0
    %220 = vmatpush1.msra.mxu0 %v188
    %221 = vmatprep.subr.mxu0 0.0
    %222 = vmatpush1.msra.mxu0 %v189
    %223 = vmatprep.subr.mxu0 0.0
    %224 = vmatpush1.msra.mxu0 %v190
    %225 = vmatprep.subr.mxu0 0.0
    %226 = vmatpush1.msra.mxu0 %v191
    %227 = vmatprep.subr.mxu0 0.0
    %228 = vmatpush1.msra.mxu0 %v192
    %229 = vmatprep.subr.mxu0 0.0
    %230 = vmatpush1.msra.mxu0 %v193
    %231 = vmatprep.subr.mxu0 0.0
    %232 = vmatpush1.msra.mxu0 %v194
    %233 = vmatprep.subr.mxu0 0.0
    %234 = vmatpush1.msra.mxu0 %v195
    %235 = vmatprep.subr.mxu0 0.0
    %236 = vmatpush1.msra.mxu0 0.0
    %237 = vmatprep.subr.mxu0 0.0
    %238 = vmatpush1.msra.mxu0 0.0
    %239 = vmatprep.subr.mxu0 0.0
    %240 = vmatpush1.msra.mxu0 0.0
    %241 = vmatprep.subr.mxu0 0.0
    %242 = vmatpush1.msra.mxu0 0.0
    %243 = vmatprep.subr.mxu0 0.0
    %244 = vmatpush1.msra.mxu0 0.0
    %245 = vmatprep.subr.mxu0 0.0
    %246 = vmatpush1.msra.mxu0 0.0
    %247 = vmatprep.subr.mxu0 0.0
    %248 = vmatpush1.msra.mxu0 0.0
    %249 = vmatprep.subr.mxu0 0.0
    %250 = vmatpush1.msra.mxu0 0.0
    %251 = vmatprep.subr.mxu0 0.0
    %252 = vmatpush1.msra.mxu0 0.0
    %253 = vmatprep.subr.mxu0 0.0
    %254 = vmatpush1.msra.mxu0 0.0
    %255 = vmatprep.subr.mxu0 0.0
    %256 = vmatpush1.msra.mxu0 0.0
    %257 = vmatprep.subr.mxu0 0.0
    %258 = vmatpush1.msra.mxu0 0.0
    %259 = vmatprep.subr.mxu0 0.0
    %260 = vmatpush1.msra.mxu0 0.0
    %261 = vmatprep.subr.mxu0 0.0
    %262 = vmatpush1.msra.mxu0 0.0
    %263 = vmatprep.subr.mxu0 0.0
    %264 = vmatpush1.msra.mxu0 0.0
    %265 = vmatprep.subr.mxu0 0.0
    %266 = vmatpush1.msra.mxu0 0.0
    %267 = vmatprep.mubr.f32.mxu0 0.0
    %268 = vmatmul.mubr.f32.gmra.mrb[0].mxu0 %v178
    %v269 = vpop.f32.mrb[0].mxu0
    %v270 = vadd.f32 %v201, %v269
    %v271 = vpop.f32.mrb[0].mxu0
    %272 = vmatprep.mubr.f32.mxu0 0.0
    %273 = vmatmul.mubr.f32.gmra.mrb[0].mxu0 %v179
    %v274 = vpop.f32.mrb[0].mxu0
    %v275 = vadd.f32 %v201, %v274
    %v276 = vpop.f32.mrb[0].mxu0
    %277 = vdwg.mxu0
    %v278 = vadd.f32 %v62, %v270
    %v279 = vadd.f32 %v63, %v275
    %280 = vst [vmem:[#allocation8] sm:$0xff] %v278
    %281 = vst [vmem:[#allocation8 + $0x8] sm:$0xff] %v279
    // Predicated region
    $region34: #{tpu_custom_call.1} parent=1 // pred_check
      _
    $region35: #{tpu_custom_call.1} parent=1 // pred_check_branch
      %283 = sbr.rel (0) target = $region37
    $region36: #{tpu_custom_call.1} parent=1 // pred_region
      %s285 = ssub.s32 256, 256
      %286 = vsyncadd [#allocation4], %s285
      %s287 = sshll.u32 [#allocation8], 4
      %s288 = int_to_ptr.vmem [resolvable:$true] %s287
      %293 = dma.vmem_to_hbm [thread:$0]  %s288, 256, %s5, [#allocation4], 128, 128, 8
    $region37: #{tpu_custom_call.1} parent=1 // pred_fallthru
      _
    // Predicated region
    $region38: #{tpu_custom_call.1} parent=1 // pred_check
      _
    $region39: #{tpu_custom_call.1} parent=1 // pred_check_branch
      %295 = sbr.rel (0) target = $region41
    $region40: #{tpu_custom_call.1} parent=1 // pred_region
      %296 = dma.done [#allocation4], 256
    $region41: #{tpu_custom_call.1} parent=1 // pred_fallthru
      _
    %297 = vsyncpa [#allocation3], 1
    %298 = vsyncpa [#allocation6], 1
    %299 = vsyncpa [#allocation4], 1

</llo_original>
